<compile_context>
chip_gen: v6e
topology: v6e:2x2x1
jax: 0.10.0
libtpu: 0.0.40
codegen_flags: <defaults>
</compile_context>

<pallas_src>
import functools

import jax
import jax.numpy as jnp
from jax import lax
from jax.experimental import pallas as pl
from jax.experimental.pallas import tpu as pltpu


# ----------------------------------------------------------------------------
# forward(): exact semantics = zeros((N, L-1, vocab_size+1)).
# Per perf review, a Pallas kernel here would force an HBM write of constants
# (~78 MB at PDVC sizes) that XLA can constant-fold / DCE / fuse away, so this
# is intentionally plain JAX.
# ----------------------------------------------------------------------------
def puppet_forward(event, clip, clip_mask, seq, vocab_size):
    del event, clip, clip_mask  # unused, as in the PyTorch module
    N, L = seq.shape
    return jnp.zeros((N, L - 1, vocab_size + 1), jnp.float32)


# ----------------------------------------------------------------------------
# build_loss kernels:
#   loss[n] = -sum_l mask[n,l] * input[n,l,target[n,l]] / (sum_l mask[n,l]+1e-6)
# Output is stored lane-dense as (N, 128) (loss broadcast across lanes,
# column 0 read back) to avoid masked narrow stores.
# ----------------------------------------------------------------------------
def _loss_kernel_single(inp_ref, tgt_ref, mask_ref, o_ref):
    """Whole vocab in one block: no reduction axis, no accumulator."""
    inp = inp_ref[...]                      # (n_t, Lm, V1)  f32
    tgt = tgt_ref[...]                      # (n_t, Lm)      i32
    mask = mask_ref[...]                    # (n_t, Lm)      f32
    _, lm, v1 = inp.shape

    # 2-D lane iota (not a 3-D materialization) + guarded targets.
    lane_iota = lax.broadcasted_iota(jnp.int32, (lm, v1), 1)
    tgt_g = jnp.where((tgt >= 0) & (tgt < v1), tgt, -1)
    picked = jnp.where(lane_iota[None, :, :] == tgt_g[:, :, None], inp, 0.0)
    picked = picked.sum(axis=2)                              # (n_t, Lm)

    num = (picked * mask).sum(axis=1, keepdims=True)         # (n_t, 1)
    den = mask.sum(axis=1, keepdims=True) + 1e-6             # (n_t, 1)
    o_ref[...] = jnp.broadcast_to(-(num / den), o_ref.shape)


def _loss_kernel_reduce(inp_ref, tgt_ref, mask_ref, o_ref, acc_ref, *, v1_total):
    """Vocab tiled: grid = (batch, vocab); vocab is the innermost reduction axis."""
    k = pl.program_id(1)

    @pl.when(k == 0)
    def _():
        acc_ref[...] = jnp.zeros_like(acc_ref)

    inp = inp_ref[...]                      # (n_t, Lm, v_tile) f32
    tgt = tgt_ref[...]                      # (n_t, Lm)         i32
    _, lm, vt = inp.shape

    lane_iota = lax.broadcasted_iota(jnp.int32, (lm, vt), 1)
    # Shift the target into this tile's local lane range; guard out-of-range
    # targets so padded tail lanes (global index >= V1) can never be selected.
    tgt_g = jnp.where((tgt >= 0) & (tgt < v1_total), tgt - k * vt, -1)
    picked = jnp.where(lane_iota[None, :, :] == tgt_g[:, :, None], inp, 0.0)
    acc_ref[...] += picked.sum(axis=2)                        # (n_t, Lm)

    @pl.when(k == pl.num_programs(1) - 1)
    def _():
        mask = mask_ref[...]                                  # (n_t, Lm)
        num = (acc_ref[...] * mask).sum(axis=1, keepdims=True)
        den = mask.sum(axis=1, keepdims=True) + 1e-6
        o_ref[...] = jnp.broadcast_to(-(num / den), o_ref.shape)


def _vmem_limit_bytes(n_tile, lm, v_tile):
    """Scoped-VMEM request: 2x-buffered blocks + scratch + headroom, clamped to
    a value that is legal on every generation (v5e raises its 16 MiB scoped
    default; v7x stays within its 32 MiB scoped / 64 MiB physical budget)."""
    big = n_tile * lm * v_tile * 4
    small = 2 * n_tile * lm * 4 + n_tile * 128 * 4
    need = 2 * (big + small) + n_tile * lm * 4 + (2 << 20)
    return int(min(max(need, 16 << 20), 32 << 20))


def puppet_build_loss(inp, target, mask, vocab_size, *,
                      block_budget_bytes=6 * 1024 * 1024):
    """Exact semantics of PuppetCaptionModel.build_loss.

    `block_budget_bytes` sizes the (n_tile, Lm, v_tile) input block (~2-8 MB is
    the HBM-roofline sweet spot; double-buffered it stays under every
    generation's VMEM limits via vmem_limit_bytes).
    """
    N, Lm, V1 = inp.shape
    assert V1 == vocab_size + 1
    target = target.astype(jnp.int32)
    mask = mask.astype(jnp.float32)

    cost = pl.CostEstimate(
        flops=2 * N * Lm * V1,
        transcendentals=0,
        bytes_accessed=N * Lm * V1 * 4 + 2 * N * Lm * 4 + N * 128 * 4,
    )

    row_bytes = Lm * V1 * 4  # one batch row, full vocab

    if row_bytes <= block_budget_bytes:
        # --- Fast path: whole vocab in one block; grid = (batch_tiles,). ---
        rows_budget = max(1, block_budget_bytes // row_bytes)
        if N <= 8:
            n_tile = N  # single step; tiny problem, block == full array dims
        else:
            # Multiple of 8 (sublane rule on the 2-D target/mask/out blocks),
            # capped at N//2 so the batch grid keeps >= 2 steps for v7x's two
            # TensorCores (and stays within the block budget).
            n_tile = min(rows_budget, N // 2)
            n_tile = max(8, (n_tile // 8) * 8)
        grid = (pl.cdiv(N, n_tile),)

        out = pl.pallas_call(
            _loss_kernel_single,
            out_shape=jax.ShapeDtypeStruct((N, 128), jnp.float32),
            grid_spec=pltpu.PrefetchScalarGridSpec(
                num_scalar_prefetch=0,
                grid=grid,
                in_specs=[
                    pl.BlockSpec((n_tile, Lm, V1), lambda i: (i, 0, 0)),
                    pl.BlockSpec((n_tile, Lm), lambda i: (i, 0)),
                    pl.BlockSpec((n_tile, Lm), lambda i: (i, 0)),
                ],
                out_specs=pl.BlockSpec((n_tile, 128), lambda i: (i, 0)),
            ),
            compiler_params=pltpu.CompilerParams(
                dimension_semantics=("parallel",),
                vmem_limit_bytes=_vmem_limit_bytes(n_tile, Lm, V1)),
            cost_estimate=cost,
        )(inp, target, mask)
    else:
        # --- Vocab-tiled path: grid = (batch_tiles, vocab_tiles). ---
        n_tile = min(N, 8)
        v_tile = max(128, (block_budget_bytes // (n_tile * Lm * 4)) // 128 * 128)
        v_tile = min(v_tile, V1)
        grid = (pl.cdiv(N, n_tile), pl.cdiv(V1, v_tile))

        kernel = functools.partial(_loss_kernel_reduce, v1_total=V1)
        out = pl.pallas_call(
            kernel,
            out_shape=jax.ShapeDtypeStruct((N, 128), jnp.float32),
            grid_spec=pltpu.PrefetchScalarGridSpec(
                num_scalar_prefetch=0,
                grid=grid,
                in_specs=[
                    pl.BlockSpec((n_tile, Lm, v_tile), lambda i, k: (i, 0, k)),
                    pl.BlockSpec((n_tile, Lm), lambda i, k: (i, 0)),
                    pl.BlockSpec((n_tile, Lm), lambda i, k: (i, 0)),
                ],
                out_specs=pl.BlockSpec((n_tile, 128), lambda i, k: (i, 0)),
                scratch_shapes=[pltpu.VMEM((n_tile, Lm), jnp.float32)],
            ),
            compiler_params=pltpu.CompilerParams(
                dimension_semantics=("parallel", "arbitrary"),
                vmem_limit_bytes=_vmem_limit_bytes(n_tile, Lm, v_tile)),
            cost_estimate=cost,
        )(inp, target, mask)

    return out[:, 0]


# ----------------------------------------------------------------------------
# sample(): returns ((N,3) zeros, (N,3) zeros) — trivial, plain JAX glue.
# ----------------------------------------------------------------------------
def puppet_sample(event, clip, clip_mask):
    del event, clip_mask
    N = clip.shape[0]
    z = jnp.zeros((N, 3), jnp.float32)
    return z, z


# TODO(synk): `puppet_layer = nn.Linear(1, 1)` holds parameters that are never
# used by forward/sample/build_loss, so no kernel is emitted for it.

if __name__ == "__main__":
    key = jax.random.PRNGKey(0)
    (k_e, k_c, k_s, k_i, k_t, k_m, k_i2, k_t2, k_m2) = jax.random.split(key, 9)

    # Small, deterministic shapes consistent with the module's forward().
    N, T, C, L = 2, 16, 32, 8
    vocab_size = 12
    V1 = vocab_size + 1

    event = jax.random.normal(k_e, (N, C), jnp.float32)
    clip = jax.random.normal(k_c, (N, T, C), jnp.float32)
    clip_mask = jnp.ones((N, T), jnp.float32)
    seq = jax.random.randint(k_s, (N, L), 0, V1, jnp.int32)

    # --- forward ---
    out = puppet_forward(event, clip, clip_mask, seq, vocab_size)
    out = jax.block_until_ready(out)
    assert out.shape == (N, L - 1, V1)
    assert out.dtype == jnp.float32
    assert bool(jnp.all(out == 0.0))

    def ref_loss(x, tgt, msk, v1):
        oh = jax.nn.one_hot(tgt, v1, dtype=jnp.float32)
        return -(oh * x * msk[..., None]).sum(2).sum(1) / (msk.sum(1) + 1e-6)

    # --- build_loss: single-vocab-block fast path ---
    loss_inp = jax.random.normal(k_i, (N, L - 1, V1), jnp.float32)
    target = jax.random.randint(k_t, (N, L - 1), 0, V1, jnp.int32)
    mask = (jax.random.uniform(k_m, (N, L - 1)) > 0.3).astype(jnp.float32)
    loss = jax.block_until_ready(
        puppet_build_loss(loss_inp, target, mask, vocab_size))
    ref = ref_loss(loss_inp, target, mask, V1)
    assert jnp.allclose(loss, ref, atol=1e-5, rtol=1e-5), (loss, ref)

    # --- build_loss: vocab-tiled reduction path (forced via a tiny budget) ---
    N2, Lm2, vocab2 = 4, 6, 299
    V1b = vocab2 + 1
    inp2 = jax.random.normal(k_i2, (N2, Lm2, V1b), jnp.float32)
    tgt2 = jax.random.randint(k_t2, (N2, Lm2), 0, V1b, jnp.int32)
    msk2 = (jax.random.uniform(k_m2, (N2, Lm2)) > 0.5).astype(jnp.float32)
    loss2 = jax.block_until_ready(
        puppet_build_loss(inp2, tgt2, msk2, vocab2, block_budget_bytes=4096))
    ref2 = ref_loss(inp2, tgt2, msk2, V1b)
    assert jnp.allclose(loss2, ref2, atol=1e-5, rtol=1e-5), (loss2, ref2)

    # --- sample (trivial) ---
    s_out, s_prob = puppet_sample(event, clip, clip_mask)
    assert s_out.shape == (N, 3) and s_prob.shape == (N, 3)

    print("KERNEL_OK")
</pallas_src>

<mosaic_0001>
module attributes {stable_mosaic.version = 11 : i64} {
  func.func @_loss_kernel_single(%arg0: i32, %arg1: memref<2x7x13xf32, #tpu.memory_space<vmem>>, %arg2: memref<2x7xi32, #tpu.memory_space<vmem>>, %arg3: memref<2x7xf32, #tpu.memory_space<vmem>>, %arg4: memref<2x128xf32, #tpu.memory_space<vmem>>) attributes {dimension_semantics = [#tpu.dimension_semantics<parallel>], iteration_bounds = array<i64: 1>, scalar_prefetch = 0 : i64, scratch_operands = 0 : i64, tpu.core_type = #tpu.core_type<tc>, window_params = [{transform_indices = @transform_0, window_bounds = array<i64: 2, 7, 13>}, {transform_indices = @transform_1, window_bounds = array<i64: 2, 7>}, {transform_indices = @transform_2, window_bounds = array<i64: 2, 7>}, {transform_indices = @transform_3, window_bounds = array<i64: 2, 128>}]} {
    %c0 = arith.constant 0 : index
    %c0_0 = arith.constant 0 : index
    %c0_1 = arith.constant 0 : index
    %0 = vector.load %arg1[%c0, %c0_0, %c0_1] : memref<2x7x13xf32, #tpu.memory_space<vmem>>, vector<2x7x13xf32>
    %c0_2 = arith.constant 0 : index
    %c0_3 = arith.constant 0 : index
    %1 = vector.load %arg2[%c0_2, %c0_3] : memref<2x7xi32, #tpu.memory_space<vmem>>, vector<2x7xi32>
    %c0_4 = arith.constant 0 : index
    %c0_5 = arith.constant 0 : index
    %2 = vector.load %arg3[%c0_4, %c0_5] : memref<2x7xf32, #tpu.memory_space<vmem>>, vector<2x7xf32>
    %3 = tpu.iota {dimensions = array<i32: 1>} : vector<7x13xi32>
    %c0_i32 = arith.constant 0 : i32
    %4 = vector.broadcast %c0_i32 : i32 to vector<2x7xi32>
    %5 = arith.cmpi sge, %1, %4 : vector<2x7xi32>
    %c13_i32 = arith.constant 13 : i32
    %6 = vector.broadcast %c13_i32 : i32 to vector<2x7xi32>
    %7 = arith.cmpi slt, %1, %6 : vector<2x7xi32>
    %8 = arith.andi %5, %7 : vector<2x7xi1>
    %c-1_i32 = arith.constant -1 : i32
    %9 = vector.broadcast %c-1_i32 : i32 to vector<2x7xi32>
    %10 = arith.select %8, %1, %9 : vector<2x7xi1>, vector<2x7xi32>
    %11 = vector.shape_cast %3 : vector<7x13xi32> to vector<1x7x13xi32>
    %12 = vector.shape_cast %10 : vector<2x7xi32> to vector<2x7x1xi32>
    %13 = vector.broadcast %11 : vector<1x7x13xi32> to vector<2x7x13xi32>
    %14 = vector.broadcast %12 : vector<2x7x1xi32> to vector<2x7x13xi32>
    %15 = arith.cmpi eq, %13, %14 : vector<2x7x13xi32>
    %cst = arith.constant 0.000000e+00 : f32
    %16 = vector.broadcast %cst : f32 to vector<2x7x13xf32>
    %17 = arith.select %15, %0, %16 : vector<2x7x13xi1>, vector<2x7x13xf32>
    %cst_6 = arith.constant dense<0.000000e+00> : vector<2x7xf32>
    %18 = vector.multi_reduction <add>, %17, %cst_6 [2] : vector<2x7x13xf32> to vector<2x7xf32>
    %19 = arith.mulf %18, %2 : vector<2x7xf32>
    %cst_7 = arith.constant dense<0.000000e+00> : vector<2xf32>
    %20 = vector.multi_reduction <add>, %19, %cst_7 [1] : vector<2x7xf32> to vector<2xf32>
    %21 = vector.shape_cast %20 : vector<2xf32> to vector<2x1xf32>
    %cst_8 = arith.constant dense<0.000000e+00> : vector<2xf32>
    %22 = vector.multi_reduction <add>, %2, %cst_8 [1] : vector<2x7xf32> to vector<2xf32>
    %23 = vector.shape_cast %22 : vector<2xf32> to vector<2x1xf32>
    %cst_9 = arith.constant 9.99999997E-7 : f32
    %24 = vector.broadcast %cst_9 : f32 to vector<2x1xf32>
    %25 = arith.addf %23, %24 : vector<2x1xf32>
    %26 = arith.divf %21, %25 : vector<2x1xf32>
    %cst_10 = arith.constant 0.000000e+00 : f32
    %27 = vector.broadcast %cst_10 : f32 to vector<2x1xf32>
    %28 = arith.subf %27, %26 : vector<2x1xf32>
    %29 = vector.shape_cast %28 : vector<2x1xf32> to vector<2x1xf32>
    %30 = vector.broadcast %29 : vector<2x1xf32> to vector<2x128xf32>
    %c0_11 = arith.constant 0 : index
    %c0_12 = arith.constant 0 : index
    %31 = vector.load %arg4[%c0_11, %c0_12] : memref<2x128xf32, #tpu.memory_space<vmem>>, vector<2x128xf32>
    tpu.vector_store %arg4[%c0_11, %c0_12], %30 {strides = array<i32>} : memref<2x128xf32, #tpu.memory_space<vmem>>, vector<2x128xf32>,
    return
  }
  func.func @transform_0(%arg0: i32) -> (i32, i32, i32) {
    %c0_i32 = arith.constant 0 : i32
    %c0_i32_0 = arith.constant 0 : i32
    %c0_i32_1 = arith.constant 0 : i32
    return %arg0, %c0_i32, %c0_i32_0 : i32, i32, i32
  }
  func.func @transform_1(%arg0: i32) -> (i32, i32) {
    %c0_i32 = arith.constant 0 : i32
    %c0_i32_0 = arith.constant 0 : i32
    return %arg0, %c0_i32 : i32, i32
  }
  func.func @transform_2(%arg0: i32) -> (i32, i32) {
    %c0_i32 = arith.constant 0 : i32
    %c0_i32_0 = arith.constant 0 : i32
    return %arg0, %c0_i32 : i32, i32
  }
  func.func @transform_3(%arg0: i32) -> (i32, i32) {
    %c0_i32 = arith.constant 0 : i32
    %c0_i32_0 = arith.constant 0 : i32
    return %arg0, %c0_i32 : i32, i32
  }
}

</mosaic_0001>

<llo_original>
// kernel: tpu_custom_call.1
$region0: #{tpu_custom_call.1}
  #allocation0 [shape = 'u32[]', space=smem, size = 0x4, offset = 0x4, fixed_abs, tag = 'smem constant byte address 0x4 - core index']
  #allocation1 [shape = 'u32[144,128]{1,0:T(1,128)}', space=vmem, size = 0x12000, scoped, tag = 'internal scratch']
  %s0 = inlined_call_operand.vmem [shape: f32[2,7,13], index: 0, kind: input, shape index: {}]
  %s1 = inlined_call_operand.vmem [shape: s32[2,7], index: 1, kind: input, shape index: {}]
  %s2 = inlined_call_operand.vmem [shape: f32[2,7], index: 2, kind: input, shape index: {}]
  %s3 = inlined_call_operand.hbm [shape: f32[2,128], index: 3, kind: output, shape index: {}]
  %s4 = sld [smem:[#allocation0]]
  $region22: #{tpu_custom_call.1} parent=0
    _
  %s6 = ssub.s32 1, %s4
  %s7 = scalar_select 0, %s6, %s4
  $region1: #{tpu_custom_call.1} parent=0
    #allocation2 [shape = 'u8[1024]{0}', space=vmem, size = 0x400, scoped, tag = 'output window, operand 0, single buffered']
    #allocation3 [shape = 's32[1]{0}', space=sflag, size = 0x4, scoped, tag = 'scoped memory for tpu_custom_call.1']
    %8 = vsyncpa [#allocation3], 0
    // Predicated region
    $region2: #{tpu_custom_call.1} parent=1 // pred_check
      _
    $region3: #{tpu_custom_call.1} parent=1 // pred_check_branch
      %10 = sbr.rel (0) target = $region5
    $region4: #{tpu_custom_call.1} parent=1 // pred_region
      _
    $region5: #{tpu_custom_call.1} parent=1 // pred_fallthru
      _
    // Predicated region
    $region6: #{tpu_custom_call.1} parent=1 // pred_check
      _
    $region7: #{tpu_custom_call.1} parent=1 // pred_check_branch
      %12 = sbr.rel (0) target = $region9
    $region8: #{tpu_custom_call.1} parent=1 // pred_region
      _
    $region9: #{tpu_custom_call.1} parent=1 // pred_fallthru
      _
    // Predicated region
    $region10: #{tpu_custom_call.1} parent=1 // pred_check
      _
    $region11: #{tpu_custom_call.1} parent=1 // pred_check_branch
      %14 = sbr.rel (0) target = $region13
    $region12: #{tpu_custom_call.1} parent=1 // pred_region
      _
    $region13: #{tpu_custom_call.1} parent=1 // pred_fallthru
      _
    %v15 = vld [vmem:[%s0] sm:$0x7f]
    %v16 = vld [vmem:[%s0 + $0x8] sm:$0x7f]
    %v17 = vld [vmem:[%s1] sm:$0x3]
    %v18 = vld [vmem:[%s2] sm:$0x3]
    %v19 = vlaneseq
    %v20 = vand.u32 %v19, 127
    %vm21 = vcmp.ge.s32.totalorder %v17, 0
    %vm22 = vcmp.lt.s32.totalorder %v17, 13
    %vm23 = vmand %vm21, %vm22
    %v24 = vsel %vm23, %v17, 4294967295
    %v25 = vlaneseq
    %v26 = vshrl.u32 %v25, 7
    %v27 = vsub.s32 0, %v26
    %v28 = vrot.slane %v24, %v27
    %30 = vbcast.lane.b32.xlu0 %v28, 256
    %v31 = vpop.permute.xlu0 %30
    %v32 = vlaneseq
    %v33 = vshrl.u32 %v32, 7
    %v34 = vsub.s32 1, %v33
    %v35 = vrot.slane %v24, %v34
    %37 = vbcast.lane.b32.xlu0 %v35, 256
    %v38 = vpop.permute.xlu0 %37
    %vm39 = vcmp.eq.s32.totalorder %v20, %v31
    %vm40 = vcmp.eq.s32.totalorder %v20, %v38
    %v41 = vsel %vm39, %v15, 0.0
    %v42 = vsel %vm40, %v16, 0.0
    %vm43 = vcmask 104448
    %v44 = vsel %vm43, %v41, 0.0
    %45 = vadd.xlane.f32.xlu0 %v44
    %v46 = vpop.xlane.xlu0 %45
    %v47 = vsel %vm43, %v42, 0.0
    %48 = vadd.xlane.f32.xlu0 %v47
    %v49 = vpop.xlane.xlu0 %48
    %v51 = vlaneseq
    %v52 = vshrl.u32 %v51, 7
    %v53 = vsub.s32 0, %v52
    %v54 = vrot.slane %v18, %v53
    %56 = vbcast.lane.b32.xlu0 %v54, 256
    %v57 = vpop.permute.xlu0 %56
    %v58 = vlaneseq
    %v59 = vshrl.u32 %v58, 7
    %v60 = vsub.s32 1, %v59
    %v61 = vrot.slane %v18, %v60
    %63 = vbcast.lane.b32.xlu0 %v61, 256
    %v64 = vpop.permute.xlu0 %63
    %v67 = vmul.f32 %v46, %v57
    %v68 = vmul.f32 %v49, %v64
    %71 = vset.pattern.permute.xlu0 0
    %72 = vperm.xlu0 %71, %v67
    %v73 = vpop.permute.xlu0 %72
    %74 = vset.pattern.permute.xlu0 0
    %75 = vperm.xlu0 %74, %v68
    %v76 = vpop.permute.xlu0 %75
    %v77 = vlaneseq
    %v78 = vshrl.u32 %v77, 7
    %v79 = vsub.s32 %v20, %v78
    %v80 = vrot.slane %v73, %v79
    %v81 = vlaneseq
    %v82 = vshrl.u32 %v81, 7
    %v83 = vsub.s32 %v20, %v82
    %v84 = vrot.slane %v76, %v83
    %vm85 = vcmask 1041409
    %v86 = vsel %vm85, %v84, %v80
    %vm88 = vcmask 50176
    %v89 = vsel %vm88, %v86, 0.0
    %90 = vadd.xlane.f32.xlu0 %v89
    %v91 = vpop.xlane.xlu0 %90
    %v92 = vsel %vm88, %v18, 0.0
    %93 = vadd.xlane.f32.xlu0 %v92
    %v94 = vpop.xlane.xlu0 %93
    %v95 = vadd.f32 %v94, 1e-06
    %v96 = vrcp.pop %v95
    %v97 = vmul.f32 %v91, %v96
    %v98 = vsub.f32 0.0, %v97
    %99 = vst [vmem:[#allocation2] sm:$0x3] %v98
    // Predicated region
    $region14: #{tpu_custom_call.1} parent=1 // pred_check
      _
    $region15: #{tpu_custom_call.1} parent=1 // pred_check_branch
      %101 = sbr.rel (0) target = $region17
    $region16: #{tpu_custom_call.1} parent=1 // pred_region
      %s103 = ssub.s32 32, 32
      %104 = vsyncadd [#allocation3], %s103
      %s106 = sshll.u32 [#allocation2], 4
      %s107 = int_to_ptr.vmem [resolvable:$true] %s106
      %109 = dma.vmem_to_hbm [thread:$0]  %s107, 32, %s3, [#allocation3]
    $region17: #{tpu_custom_call.1} parent=1 // pred_fallthru
      _
    // Predicated region
    $region18: #{tpu_custom_call.1} parent=1 // pred_check
      _
    $region19: #{tpu_custom_call.1} parent=1 // pred_check_branch
      %111 = sbr.rel (0) target = $region21
    $region20: #{tpu_custom_call.1} parent=1 // pred_region
      %112 = dma.done [#allocation3], 32
    $region21: #{tpu_custom_call.1} parent=1 // pred_fallthru
      _
    %113 = vsyncpa [#allocation3], 1

</llo_original>
